<compile_context>
chip_gen: v7x
topology: tpu7x:2x2x1
jax: 0.10.0
libtpu: 0.0.40
codegen_flags: <defaults>
</compile_context>

<pallas_src>
import functools

import jax
import jax.numpy as jnp
from jax import lax
from jax.experimental import pallas as pl
from jax.experimental.pallas import tpu as pltpu

LANE = 128
SUBLANE = 8
STRIP_ROWS = 128                 # (128,128) f32 strip = 16 vregs per operand
_ALIGN_ELEMS = SUBLANE * LANE    # pad granularity so rows is a multiple of 8


def _tpu_config():
    """(vmem_capacity_bytes, tensorcores_per_device) with safe fallbacks."""
    kind = ""
    try:
        kind = jax.devices()[0].device_kind.lower()
    except Exception:
        pass
    vmem = None
    try:
        info = pltpu.get_tpu_info()
        v = getattr(info, "vmem_capacity_bytes", None)
        if v:
            vmem = int(v)
    except Exception:
        pass
    if vmem is None:
        # v7x has 64 MiB VMEM per TensorCore; v4/v5/v6 have 128 MiB.
        # Unknown chips fall back to the conservative 64 MiB budget.
        vmem = (128 << 20) if any(t in kind for t in ("v4", "v5", "v6")) else (64 << 20)
    num_tc = 2 if "v7" in kind else 1
    return vmem, num_tc


def _mse_partial_kernel(pred_ref, tgt_ref, psum_ref, *, rows, tile_rows, bps, strip):
    """Accumulate per-(sublane, lane) partial sums of (pred - tgt)^2.

    Grid is (num_slices, blocks_per_slice); the inner axis is the reduction
    axis and the output block (1, 8, 128) stays resident across it.
    """
    s = pl.program_id(0)   # slice (CORE_PARALLEL across TensorCores on v7x)
    i = pl.program_id(1)   # block within slice (sequential reduction axis)

    @pl.when(i == 0)
    def _init():
        psum_ref[...] = jnp.zeros_like(psum_ref)

    blk = s * bps + i                     # logical (unclamped) block index
    valid_rows = rows - blk * tile_rows   # rows of this block holding real data
    n_strips = tile_rows // strip

    def _accumulate(masked):
        def body(g, acc):
            r0 = pl.multiple_of(g * strip, strip)
            p = pred_ref[pl.ds(r0, strip), :].astype(jnp.float32)
            t = tgt_ref[pl.ds(r0, strip), :].astype(jnp.float32)
            d = p - t
            d2 = d * d
            if masked:
                row_ids = (jax.lax.broadcasted_iota(jnp.int32, (strip, LANE), 0)
                           + g * strip)
                d2 = jnp.where(row_ids < valid_rows, d2, 0.0)
            # Fold strip rows into (8,128): pure vreg adds on the VPU.
            return acc + jnp.sum(d2.reshape(strip // SUBLANE, SUBLANE, LANE), axis=0)

        return lax.fori_loop(0, n_strips, body,
                             jnp.zeros((SUBLANE, LANE), jnp.float32))

    # Fast path: full block -> no iota/compare/select work at all.
    @pl.when(valid_rows >= tile_rows)
    def _full():
        psum_ref[...] += _accumulate(masked=False)[None, :, :]

    # Slow path: partial last block of a slice (runs at most once per slice).
    # Clamped duplicate blocks have valid_rows <= 0 and are skipped entirely.
    @pl.when(jnp.logical_and(valid_rows > 0, valid_rows < tile_rows))
    def _partial():
        psum_ref[...] += _accumulate(masked=True)[None, :, :]


def mse_loss_pallas(output, target, *, max_tile_rows=None):
    """Equivalent of nn.MSELoss()(output, target.float()) -> scalar f32."""
    pred_flat = output.reshape(-1)       # reshape of contiguous array: free
    tgt_flat = target.reshape(-1)        # original dtype kept (cast in-kernel)
    n_total = pred_flat.size

    # Only pad when the element count is not a multiple of 8*128 (rare for
    # NCHW tensors).  Padded positions are zero in both operands -> contribute
    # zero to the sum.  Common shapes take the copy-free path.
    pad = (-n_total) % _ALIGN_ELEMS
    if pad:
        pred_flat = jnp.pad(pred_flat, (0, pad))
        tgt_flat = jnp.pad(tgt_flat, (0, pad))

    rows = pred_flat.size // LANE        # multiple of 8 by construction
    pred2 = pred_flat.reshape(rows, LANE)
    tgt2 = tgt_flat.reshape(rows, LANE)

    vmem_capacity, num_tc = _tpu_config()
    if vmem_capacity >= (128 << 20):     # v5e / v6e: 128 MiB VMEM
        tile_budget, vmem_limit = 48 << 20, 64 << 20
    else:                                # v7x (or unknown): 64 MiB VMEM
        tile_budget, vmem_limit = 32 << 20, 40 << 20

    # Byte-budgeted, dtype-aware tile sizing (2 pipeline buffers per input).
    bytes_per_row = LANE * (pred2.dtype.itemsize + tgt2.dtype.itemsize)
    budget_rows = max(SUBLANE, tile_budget // (2 * bytes_per_row))
    budget_rows = (budget_rows // SUBLANE) * SUBLANE
    if max_tile_rows is not None:        # test hook: force small tiles
        budget_rows = max(SUBLANE,
                          min(budget_rows, (max_tile_rows // SUBLANE) * SUBLANE))
    tile_rows = min(budget_rows, rows)
    if tile_rows >= STRIP_ROWS:
        strip = STRIP_ROWS
        tile_rows = (tile_rows // STRIP_ROWS) * STRIP_ROWS
    else:
        strip = tile_rows                # single-strip tile (small inputs)

    nblocks = pl.cdiv(rows, tile_rows)
    num_slices = 2 if (num_tc >= 2 and nblocks >= 2) else 1

    def _run(n_slices):
        bps = pl.cdiv(nblocks, n_slices)
        lead = pltpu.CORE_PARALLEL if n_slices > 1 else pltpu.ARBITRARY
        kernel = functools.partial(_mse_partial_kernel, rows=rows,
                                   tile_rows=tile_rows, bps=bps, strip=strip)

        def in_map(si, bi):
            # Clamp so the DMA never targets a fully out-of-bounds block; the
            # kernel skips clamped duplicates (valid_rows <= 0).
            return (jnp.minimum(si * bps + bi, nblocks - 1), 0)

        return pl.pallas_call(
            kernel,
            out_shape=jax.ShapeDtypeStruct((n_slices, SUBLANE, LANE), jnp.float32),
            grid_spec=pltpu.PrefetchScalarGridSpec(
                num_scalar_prefetch=0,
                grid=(n_slices, bps),
                in_specs=[
                    pl.BlockSpec((tile_rows, LANE), in_map),
                    pl.BlockSpec((tile_rows, LANE), in_map),
                ],
                out_specs=pl.BlockSpec((1, SUBLANE, LANE), lambda si, bi: (si, 0, 0)),
            ),
            compiler_params=pltpu.CompilerParams(
                dimension_semantics=(lead, pltpu.ARBITRARY),
                vmem_limit_bytes=vmem_limit,
            ),
        )(pred2, tgt2)

    if num_slices > 1:
        try:
            partials = _run(num_slices)
        except Exception:
            # Conservative fallback if CORE_PARALLEL lowering is unavailable.
            partials = _run(1)
    else:
        partials = _run(1)

    # Single cross-lane reduce + mean normalization (tiny, done once).
    return jnp.sum(partials) / jnp.float32(n_total)


def mse_loss2_forward(output, target_dict):
    """Mirror of MSELoss2.forward(output, target) where target is a dict."""
    return mse_loss_pallas(output, target_dict["target"])


if __name__ == "__main__":
    key = jax.random.PRNGKey(0)
    k1, k2, k3, k4, k5, k6 = jax.random.split(key, 6)

    # Main case: NCHW prediction vs integer-typed target (exercises .float()).
    B, C, H, W = 2, 4, 16, 16
    output = jax.random.normal(k1, (B, C, H, W), dtype=jnp.float32)
    target_int = jax.random.randint(k2, (B, C, H, W), minval=-3, maxval=4)
    loss = jax.block_until_ready(mse_loss2_forward(output, {"target": target_int}))
    ref = jnp.mean((output - target_int.astype(jnp.float32)) ** 2)
    assert jnp.allclose(loss, ref, rtol=1e-5, atol=1e-6), (loss, ref)

    # Multi-block accumulation path (forced small tile): 24 rows, 8-row tiles.
    out_b = jax.random.normal(k3, (3, 4, 16, 16), dtype=jnp.float32)
    tgt_b = jax.random.normal(k4, (3, 4, 16, 16), dtype=jnp.float32)
    loss_b = jax.block_until_ready(mse_loss_pallas(out_b, tgt_b, max_tile_rows=8))
    ref_b = jnp.mean((out_b - tgt_b) ** 2)
    assert jnp.allclose(loss_b, ref_b, rtol=1e-5, atol=1e-6), (loss_b, ref_b)

    # Partial (masked) last block path: 24 rows, 16-row tile.
    loss_c = jax.block_until_ready(mse_loss_pallas(out_b, tgt_b, max_tile_rows=16))
    assert jnp.allclose(loss_c, ref_b, rtol=1e-5, atol=1e-6), (loss_c, ref_b)

    # Ragged tail: element count not a multiple of 8*128.
    out_d = jax.random.normal(k3, (2, 3, 5, 7), dtype=jnp.float32)   # 210 elems
    tgt_d = jax.random.normal(k4, (2, 3, 5, 7), dtype=jnp.float32)
    loss_d = jax.block_until_ready(mse_loss_pallas(out_d, tgt_d))
    ref_d = jnp.mean((out_d - tgt_d) ** 2)
    assert jnp.allclose(loss_d, ref_d, rtol=1e-5, atol=1e-6), (loss_d, ref_d)

    # Multi-strip fast path + narrow-dtype target (in-kernel bf16->f32 cast).
    out_e = jax.random.normal(k5, (4, 8, 32, 32), dtype=jnp.float32)  # 256 rows
    tgt_e = jax.random.normal(k6, (4, 8, 32, 32), dtype=jnp.float32).astype(jnp.bfloat16)
    loss_e = jax.block_until_ready(mse_loss_pallas(out_e, tgt_e))
    ref_e = jnp.mean((out_e - tgt_e.astype(jnp.float32)) ** 2)
    assert jnp.allclose(loss_e, ref_e, rtol=1e-5, atol=1e-6), (loss_e, ref_e)

    print("KERNEL_OK")
</pallas_src>

<mosaic_0001>
module attributes {stable_mosaic.version = 11 : i64} {
  func.func @_mse_partial_kernel(%arg0: i32, %arg1: i32, %arg2: memref<16x128xf32, #tpu.memory_space<vmem>>, %arg3: memref<16x128xi32, #tpu.memory_space<vmem>>, %arg4: memref<1x8x128xf32, #tpu.memory_space<vmem>>) attributes {dimension_semantics = [#tpu.dimension_semantics<arbitrary>, #tpu.dimension_semantics<arbitrary>], iteration_bounds = array<i64: 1, 1>, scalar_prefetch = 0 : i64, scratch_operands = 0 : i64, tpu.core_type = #tpu.core_type<tc>, window_params = [{transform_indices = @transform_0, window_bounds = array<i64: 16, 128>}, {transform_indices = @transform_1, window_bounds = array<i64: 16, 128>}, {transform_indices = @transform_2, window_bounds = array<i64: 1, 8, 128>}]} {
    %c0_i32 = arith.constant 0 : i32
    %0 = arith.cmpi eq, %arg1, %c0_i32 : i32
    %1 = arith.extui %0 : i1 to i32
    %c0_i32_0 = arith.constant 0 : i32
    %2 = arith.cmpi ne, %1, %c0_i32_0 : i32
    scf.if %2 {
      %cst = arith.constant 0.000000e+00 : f32
      %15 = vector.broadcast %cst : f32 to vector<1x8x128xf32>
      %c0 = arith.constant 0 : index
      %c0_7 = arith.constant 0 : index
      %c0_8 = arith.constant 0 : index
      %16 = vector.load %arg4[%c0, %c0_7, %c0_8] : memref<1x8x128xf32, #tpu.memory_space<vmem>>, vector<1x8x128xf32>
      tpu.vector_store %arg4[%c0, %c0_7, %c0_8], %15 {strides = array<i32>} : memref<1x8x128xf32, #tpu.memory_space<vmem>>, vector<1x8x128xf32>,
    } else {
    }
    %c1_i32 = arith.constant 1 : i32
    %3 = arith.muli %arg0, %c1_i32 : i32
    %4 = arith.addi %3, %arg1 : i32
    %c16_i32 = arith.constant 16 : i32
    %5 = arith.muli %4, %c16_i32 : i32
    %c16_i32_1 = arith.constant 16 : i32
    %6 = arith.subi %c16_i32_1, %5 : i32
    %c16_i32_2 = arith.constant 16 : i32
    %7 = arith.cmpi sge, %6, %c16_i32_2 : i32
    %8 = arith.extui %7 : i1 to i32
    %c0_i32_3 = arith.constant 0 : i32
    %9 = arith.cmpi ne, %8, %c0_i32_3 : i32
    scf.if %9 {
      %c0 = arith.constant 0 : index
      %c0_7 = arith.constant 0 : index
      %c0_8 = arith.constant 0 : index
      %15 = vector.load %arg4[%c0, %c0_7, %c0_8] : memref<1x8x128xf32, #tpu.memory_space<vmem>>, vector<1x8x128xf32>
      %cst = arith.constant 0.000000e+00 : f32
      %16 = vector.broadcast %cst : f32 to vector<8x128xf32>
      %c0_i32_9 = arith.constant 0 : i32
      %c16_i32_10 = arith.constant 16 : i32
      %17 = arith.muli %c0_i32_9, %c16_i32_10 : i32
      %18 = tpu.assume_multiple %17, 16 : i32
      %19 = arith.index_cast %18 : i32 to index
      %c0_11 = arith.constant 0 : index
      %20 = vector.load %arg2[%19, %c0_11] : memref<16x128xf32, #tpu.memory_space<vmem>>, vector<16x128xf32>
      %21 = arith.index_cast %18 : i32 to index
      %c0_12 = arith.constant 0 : index
      %22 = vector.load %arg3[%21, %c0_12] : memref<16x128xi32, #tpu.memory_space<vmem>>, vector<16x128xi32>
      %23 = arith.sitofp %22 : vector<16x128xi32> to vector<16x128xf32>
      %24 = arith.subf %20, %23 : vector<16x128xf32>
      %25 = arith.mulf %24, %24 : vector<16x128xf32>
      %26 = vector.shape_cast %25 : vector<16x128xf32> to vector<2x8x128xf32>
      %cst_13 = arith.constant dense<0.000000e+00> : vector<8x128xf32>
      %27 = vector.multi_reduction <add>, %26, %cst_13 [0] : vector<2x8x128xf32> to vector<8x128xf32>
      %28 = arith.addf %16, %27 : vector<8x128xf32>
      %c1_i32_14 = arith.constant 1 : i32
      %29 = vector.shape_cast %28 : vector<8x128xf32> to vector<1x8x128xf32>
      %30 = arith.addf %15, %29 : vector<1x8x128xf32>
      %c0_15 = arith.constant 0 : index
      %c0_16 = arith.constant 0 : index
      %c0_17 = arith.constant 0 : index
      %31 = vector.load %arg4[%c0_15, %c0_16, %c0_17] : memref<1x8x128xf32, #tpu.memory_space<vmem>>, vector<1x8x128xf32>
      tpu.vector_store %arg4[%c0_15, %c0_16, %c0_17], %30 {strides = array<i32>} : memref<1x8x128xf32, #tpu.memory_space<vmem>>, vector<1x8x128xf32>,
    } else {
    }
    %c0_i32_4 = arith.constant 0 : i32
    %10 = arith.cmpi sgt, %6, %c0_i32_4 : i32
    %c16_i32_5 = arith.constant 16 : i32
    %11 = arith.cmpi slt, %6, %c16_i32_5 : i32
    %12 = arith.andi %10, %11 : i1
    %13 = arith.extui %12 : i1 to i32
    %c0_i32_6 = arith.constant 0 : i32
    %14 = arith.cmpi ne, %13, %c0_i32_6 : i32
    scf.if %14 {
      %c0 = arith.constant 0 : index
      %c0_7 = arith.constant 0 : index
      %c0_8 = arith.constant 0 : index
      %15 = vector.load %arg4[%c0, %c0_7, %c0_8] : memref<1x8x128xf32, #tpu.memory_space<vmem>>, vector<1x8x128xf32>
      %cst = arith.constant 0.000000e+00 : f32
      %16 = vector.broadcast %cst : f32 to vector<8x128xf32>
      %c0_i32_9 = arith.constant 0 : i32
      %c16_i32_10 = arith.constant 16 : i32
      %17 = arith.muli %c0_i32_9, %c16_i32_10 : i32
      %18 = tpu.assume_multiple %17, 16 : i32
      %19 = arith.index_cast %18 : i32 to index
      %c0_11 = arith.constant 0 : index
      %20 = vector.load %arg2[%19, %c0_11] : memref<16x128xf32, #tpu.memory_space<vmem>>, vector<16x128xf32>
      %21 = arith.index_cast %18 : i32 to index
      %c0_12 = arith.constant 0 : index
      %22 = vector.load %arg3[%21, %c0_12] : memref<16x128xi32, #tpu.memory_space<vmem>>, vector<16x128xi32>
      %23 = arith.sitofp %22 : vector<16x128xi32> to vector<16x128xf32>
      %24 = arith.subf %20, %23 : vector<16x128xf32>
      %25 = arith.mulf %24, %24 : vector<16x128xf32>
      %26 = tpu.iota {dimensions = array<i32: 0>} : vector<16x128xi32>
      %c16_i32_13 = arith.constant 16 : i32
      %27 = arith.muli %c0_i32_9, %c16_i32_13 : i32
      %28 = vector.broadcast %27 : i32 to vector<16x128xi32>
      %29 = arith.addi %26, %28 : vector<16x128xi32>
      %30 = vector.broadcast %6 : i32 to vector<16x128xi32>
      %31 = arith.cmpi slt, %29, %30 : vector<16x128xi32>
      %cst_14 = arith.constant 0.000000e+00 : f32
      %32 = vector.broadcast %cst_14 : f32 to vector<16x128xf32>
      %33 = arith.select %31, %25, %32 : vector<16x128xi1>, vector<16x128xf32>
      %34 = vector.shape_cast %33 : vector<16x128xf32> to vector<2x8x128xf32>
      %cst_15 = arith.constant dense<0.000000e+00> : vector<8x128xf32>
      %35 = vector.multi_reduction <add>, %34, %cst_15 [0] : vector<2x8x128xf32> to vector<8x128xf32>
      %36 = arith.addf %16, %35 : vector<8x128xf32>
      %c1_i32_16 = arith.constant 1 : i32
      %37 = vector.shape_cast %36 : vector<8x128xf32> to vector<1x8x128xf32>
      %38 = arith.addf %15, %37 : vector<1x8x128xf32>
      %c0_17 = arith.constant 0 : index
      %c0_18 = arith.constant 0 : index
      %c0_19 = arith.constant 0 : index
      %39 = vector.load %arg4[%c0_17, %c0_18, %c0_19] : memref<1x8x128xf32, #tpu.memory_space<vmem>>, vector<1x8x128xf32>
      tpu.vector_store %arg4[%c0_17, %c0_18, %c0_19], %38 {strides = array<i32>} : memref<1x8x128xf32, #tpu.memory_space<vmem>>, vector<1x8x128xf32>,
    } else {
    }
    return
  }
  func.func @transform_0(%arg0: i32, %arg1: i32) -> (i32, i32) {
    %c1_i32 = arith.constant 1 : i32
    %0 = arith.muli %arg0, %c1_i32 : i32
    %1 = arith.addi %0, %arg1 : i32
    %c0_i32 = arith.constant 0 : i32
    %2 = arith.minsi %1, %c0_i32 : i32
    %c0_i32_0 = arith.constant 0 : i32
    %c0_i32_1 = arith.constant 0 : i32
    return %2, %c0_i32_0 : i32, i32
  }
  func.func @transform_1(%arg0: i32, %arg1: i32) -> (i32, i32) {
    %c1_i32 = arith.constant 1 : i32
    %0 = arith.muli %arg0, %c1_i32 : i32
    %1 = arith.addi %0, %arg1 : i32
    %c0_i32 = arith.constant 0 : i32
    %2 = arith.minsi %1, %c0_i32 : i32
    %c0_i32_0 = arith.constant 0 : i32
    %c0_i32_1 = arith.constant 0 : i32
    return %2, %c0_i32_0 : i32, i32
  }
  func.func @transform_2(%arg0: i32, %arg1: i32) -> (i32, i32, i32) {
    %c0_i32 = arith.constant 0 : i32
    %c0_i32_0 = arith.constant 0 : i32
    %c0_i32_1 = arith.constant 0 : i32
    return %arg0, %c0_i32, %c0_i32_0 : i32, i32, i32
  }
}

</mosaic_0001>

<llo_original>
// kernel: tpu_custom_call.1
$region0: #{tpu_custom_call.1}
  #allocation0 [shape = 'u32[]', space=smem, size = 0x4, offset = 0x4, fixed_abs, tag = 'smem constant byte address 0x4 - core index']
  #allocation1 [shape = 'u32[144,128]{1,0:T(1,128)}', space=vmem, size = 0x12000, scoped, tag = 'internal scratch']
  %s0 = inlined_call_operand.hbm [shape: f32[16,128], index: 0, kind: input, shape index: {}]
  %s1 = inlined_call_operand.hbm [shape: s32[16,128], index: 1, kind: input, shape index: {}]
  %s2 = inlined_call_operand.hbm [shape: f32[1,8,128], index: 2, kind: output, shape index: {}]
  %s3 = sld [smem:[#allocation0]]
  $region38: #{tpu_custom_call.1} parent=0
    _
  %s5 = ssub.s32 1, %s3
  %s6 = scalar_select 0, %s5, %s3
  $region1: #{tpu_custom_call.1} parent=0
    #allocation2 [shape = 'u8[8192]{0}', space=vmem, size = 0x2000, scoped, tag = 'input window, operand 0, single buffered']
    #allocation3 [shape = 's32[1]{0}', space=sflag, size = 0x4, scoped, tag = 'scoped memory for tpu_custom_call.1']
    #allocation4 [shape = 's32[1]{0}', space=sflag, size = 0x4, scoped, tag = 'scoped memory for tpu_custom_call.1']
    #allocation5 [shape = 'u8[8192]{0}', space=vmem, size = 0x2000, scoped, tag = 'input window, operand 1, single buffered']
    #allocation6 [shape = 's32[1]{0}', space=sflag, size = 0x4, scoped, tag = 'scoped memory for tpu_custom_call.1']
    #allocation7 [shape = 'u8[4096]{0}', space=vmem, size = 0x1000, scoped, tag = 'output window, operand 0, single buffered']
    %7 = vsyncpa [#allocation3], 0
    %8 = vsyncpa [#allocation6], 0
    %9 = vsyncpa [#allocation4], 0
    // Predicated region
    $region2: #{tpu_custom_call.1} parent=1 // pred_check
      _
    $region3: #{tpu_custom_call.1} parent=1 // pred_check_branch
      %11 = sbr.rel (0) target = $region5
    $region4: #{tpu_custom_call.1} parent=1 // pred_region
      %s12 = sadd.s32 0, 0
      %p13 = scmp.lt.s32.totalorder %s12, 0
      %s14 = scalar_select %p13, %s12, 0
      %s15 = smul.u32 2, %s14
      %s17 = ssub.s32 256, 256
      %18 = vsyncadd [#allocation3], %s17
      %s19 = smul.addr %s15, 128
      %s20 = scalar_lea.hbm %s0, %s19
      %s21 = sshll.u32 [#allocation2], 4
      %s22 = int_to_ptr.vmem [resolvable:$true] %s21
      %27 = dma.hbm_to_vmem [thread:$0]  %s20, 256, %s22, [#allocation3], 128, 128, 8
    $region5: #{tpu_custom_call.1} parent=1 // pred_fallthru
      _
    // Predicated region
    $region6: #{tpu_custom_call.1} parent=1 // pred_check
      _
    $region7: #{tpu_custom_call.1} parent=1 // pred_check_branch
      %29 = sbr.rel (0) target = $region9
    $region8: #{tpu_custom_call.1} parent=1 // pred_region
      %s30 = sadd.s32 0, 0
      %p31 = scmp.lt.s32.totalorder %s30, 0
      %s32 = scalar_select %p31, %s30, 0
      %s33 = smul.u32 2, %s32
      %s35 = ssub.s32 256, 256
      %36 = vsyncadd [#allocation6], %s35
      %s37 = smul.addr %s33, 128
      %s38 = scalar_lea.hbm %s1, %s37
      %s39 = sshll.u32 [#allocation5], 4
      %s40 = int_to_ptr.vmem [resolvable:$true] %s39
      %45 = dma.hbm_to_vmem [thread:$0]  %s38, 256, %s40, [#allocation6], 128, 128, 8
    $region9: #{tpu_custom_call.1} parent=1 // pred_fallthru
      _
    // Predicated region
    $region10: #{tpu_custom_call.1} parent=1 // pred_check
      _
    $region11: #{tpu_custom_call.1} parent=1 // pred_check_branch
      %47 = sbr.rel (0) target = $region13
    $region12: #{tpu_custom_call.1} parent=1 // pred_region
      %48 = dma.done [#allocation3], 256
    $region13: #{tpu_custom_call.1} parent=1 // pred_fallthru
      _
    // Predicated region
    $region14: #{tpu_custom_call.1} parent=1 // pred_check
      _
    $region15: #{tpu_custom_call.1} parent=1 // pred_check_branch
      %50 = sbr.rel (0) target = $region17
    $region16: #{tpu_custom_call.1} parent=1 // pred_region
      %51 = dma.done [#allocation6], 256
    $region17: #{tpu_custom_call.1} parent=1 // pred_fallthru
      _
    %s52 = sadd.s32 0, 0
    %p53 = scmp.lt.s32.totalorder %s52, 0
    %s54 = scalar_select %p53, %s52, 0
    %s55 = smul.u32 2, %s54
    %s56 = sadd.s32 0, 0
    %p57 = scmp.lt.s32.totalorder %s56, 0
    %s58 = scalar_select %p57, %s56, 0
    %s59 = smul.u32 2, %s58
    %p60 = scmp.eq.s32.totalorder 0, 0
    // Predicated region
    $region18: #{tpu_custom_call.1} parent=1 // pred_check
      %p61 = pneg %p60
    $region19: #{tpu_custom_call.1} parent=1 // pred_check_branch
      %63 = sbr.rel (%p61) target = $region21
    $region20: #{tpu_custom_call.1} parent=1 // pred_region
      %64 = vst [vmem:[#allocation7] sm:$0xff] 0.0
    $region21: #{tpu_custom_call.1} parent=1 // pred_fallthru
      _
    %s65 = sadd.s32 0, 0
    %s66 = smul.u32 %s65, 16
    %s67 = ssub.s32 16, %s66
    %p68 = scmp.ge.s32.totalorder %s67, 16
    // Predicated region
    $region22: #{tpu_custom_call.1} parent=1 // pred_check
      %p69 = pneg %p68
    $region23: #{tpu_custom_call.1} parent=1 // pred_check_branch
      %71 = sbr.rel (%p69) target = $region25
    $region24: #{tpu_custom_call.1} parent=1 // pred_region
      %v72 = vld [vmem:[#allocation7] sm:$0xff]
      %v73 = vld [vmem:[#allocation2] sm:$0xff]
      %v74 = vld [vmem:[#allocation2 + $0x8] sm:$0xff]
      %v75 = vld [vmem:[#allocation5] sm:$0xff]
      %v76 = vld [vmem:[#allocation5 + $0x8] sm:$0xff]
      %v77 = vcvt.s32.f32 %v75
      %v78 = vcvt.s32.f32 %v76
      %v79 = vsub.f32 %v73, %v77
      %v80 = vsub.f32 %v74, %v78
      %v81 = vmul.f32 %v79, %v79
      %v82 = vmul.f32 %v80, %v80
      %v83 = vadd.f32 %v81, %v82
      %v84 = vadd.f32 %v83, 0.0
      %v85 = vadd.f32 %v72, %v84
      %86 = vst [vmem:[#allocation7] sm:$0xff] %v85
    $region25: #{tpu_custom_call.1} parent=1 // pred_fallthru
      _
    %p87 = scmp.gt.s32.totalorder %s67, 0
    %p88 = scmp.lt.s32.totalorder %s67, 16
    %p89 = pnand %p87, %p88
    %p90 = pneg %p89
    // Predicated region
    $region26: #{tpu_custom_call.1} parent=1 // pred_check
      _
    $region27: #{tpu_custom_call.1} parent=1 // pred_check_branch
      %92 = sbr.rel (%p89) target = $region29
    $region28: #{tpu_custom_call.1} parent=1 // pred_region
      %v93 = vld [vmem:[#allocation7] sm:$0xff]
      %v94 = vld [vmem:[#allocation2] sm:$0xff]
      %v95 = vld [vmem:[#allocation2 + $0x8] sm:$0xff]
      %v96 = vld [vmem:[#allocation5] sm:$0xff]
      %v97 = vld [vmem:[#allocation5 + $0x8] sm:$0xff]
      %v98 = vcvt.s32.f32 %v96
      %v99 = vcvt.s32.f32 %v97
      %v100 = vsub.f32 %v94, %v98
      %v101 = vsub.f32 %v95, %v99
      %v102 = vmul.f32 %v100, %v100
      %v103 = vmul.f32 %v101, %v101
      %v104 = vlaneseq
      %v105 = vshrl.u32 %v104, 7
      %v106 = vadd.s32 %v105, 8
      %v107 = vstv %s67
      %vm108 = vcmp.lt.s32.totalorder %v105, %v107
      %vm109 = vcmp.lt.s32.totalorder %v106, %v107
      %v110 = vsel %vm108, %v102, 0.0
      %v111 = vsel %vm109, %v103, 0.0
      %v112 = vadd.f32 %v110, %v111
      %v113 = vadd.f32 %v112, 0.0
      %v114 = vadd.f32 %v93, %v113
      %115 = vst [vmem:[#allocation7] sm:$0xff] %v114
    $region29: #{tpu_custom_call.1} parent=1 // pred_fallthru
      _
    // Predicated region
    $region30: #{tpu_custom_call.1} parent=1 // pred_check
      _
    $region31: #{tpu_custom_call.1} parent=1 // pred_check_branch
      %117 = sbr.rel (0) target = $region33
    $region32: #{tpu_custom_call.1} parent=1 // pred_region
      %s119 = ssub.s32 128, 128
      %120 = vsyncadd [#allocation4], %s119
      %s122 = sshll.u32 [#allocation7], 4
      %s123 = int_to_ptr.vmem [resolvable:$true] %s122
      %125 = dma.vmem_to_hbm [thread:$0]  %s123, 128, %s2, [#allocation4]
    $region33: #{tpu_custom_call.1} parent=1 // pred_fallthru
      _
    // Predicated region
    $region34: #{tpu_custom_call.1} parent=1 // pred_check
      _
    $region35: #{tpu_custom_call.1} parent=1 // pred_check_branch
      %127 = sbr.rel (0) target = $region37
    $region36: #{tpu_custom_call.1} parent=1 // pred_region
      %128 = dma.done [#allocation4], 128
    $region37: #{tpu_custom_call.1} parent=1 // pred_fallthru
      _
    %129 = vsyncpa [#allocation3], 1
    %130 = vsyncpa [#allocation6], 1
    %131 = vsyncpa [#allocation4], 1

</llo_original>
